<compile_context>
chip_gen: v5e
topology: v5e:2x2
jax: 0.10.0
libtpu: 0.0.40
codegen_flags: <defaults>
</compile_context>

<pallas_src>
import jax
import jax.numpy as jnp
from jax.experimental import pallas as pl
from jax.experimental.pallas import tpu as pltpu

LANE = 128      # last-dim multiple -> unmasked lane-dense loads/stores
SUBLANE = 8     # f32 sublane packing


def _round_up(n, m):
    return ((n + m - 1) // m) * m


def _pad_to(a, shape, dtype):
    """Zero-pad `a` (cast to dtype) up to `shape`; no-op copy avoided if equal."""
    a = a.astype(dtype)
    if tuple(a.shape) == tuple(shape):
        return a
    pads = [(0, s - d) for d, s in zip(a.shape, shape)]
    return jnp.pad(a, pads)


def full_model_kernel(x_ref, w1_ref, b1_ref, w2_ref, b2_ref, c_ref, y_ref):
    # ---- x_to_c_model: Linear + ReLU (MXU matmul, f32 accumulate, VPU epilogue)
    x = x_ref[...]
    b1 = b1_ref[...]                                    # broadcast exactly once
    c = jnp.dot(x, w1_ref[...], preferred_element_type=jnp.float32) + b1
    c = jnp.maximum(c, 0.0)
    c_ref[...] = c.astype(c_ref.dtype)                  # single lane-dense store

    # ---- c_to_y_model: Linear — consumes the in-register c (never re-read from HBM)
    b2 = b2_ref[...]
    y = jnp.dot(c.astype(w2_ref.dtype), w2_ref[...],
                preferred_element_type=jnp.float32) + b2
    y_ref[...] = y.astype(y_ref.dtype)


def full_model(x, w1, b1, w2, b2, *, block_b=None, use_bf16_matmul=False):
    """x:(B,D_in), w1:(D_in,C), b1:(1,C) or (C,), w2:(C,Y), b2:(1,Y) or (Y,)
       -> (c:(B,C), y:(B,Y))."""
    B, D_in = x.shape
    C = w1.shape[1]
    Y = w2.shape[1]

    # Lane-pad feature dims to 128 multiples (exactness argued above).
    Dp = _round_up(D_in, LANE)
    Cp = _round_up(C, LANE)
    Yp = _round_up(Y, LANE)

    # Batch tile: multiple of 8, capped so double-buffered activation tiles
    # (x, c, y) stay a tiny fraction of VMEM even on v7x (64 MiB physical).
    if block_b is None:
        block_b = min(512, _round_up(B, SUBLANE))
    TB = max(SUBLANE, _round_up(block_b, SUBLANE))
    Bp = _round_up(B, TB)

    f32 = jnp.float32
    mm_dtype = jnp.bfloat16 if use_bf16_matmul else f32

    # Zero-padded operands (matmul operands optionally bf16; biases stay f32).
    x_p = _pad_to(x, (Bp, Dp), mm_dtype)
    w1_p = _pad_to(w1, (Dp, Cp), mm_dtype)
    w2_p = _pad_to(w2, (Cp, Yp), mm_dtype)
    b1_p = _pad_to(b1.reshape(1, C), (1, Cp), f32)
    b2_p = _pad_to(b2.reshape(1, Y), (1, Yp), f32)

    grid = (Bp // TB,)

    c_p, y_p = pl.pallas_call(
        full_model_kernel,
        out_shape=(
            jax.ShapeDtypeStruct((Bp, Cp), f32),
            jax.ShapeDtypeStruct((Bp, Yp), f32),
        ),
        grid=grid,
        in_specs=[
            pl.BlockSpec((TB, Dp), lambda i: (i, 0)),   # x tiles: pipelined over batch
            pl.BlockSpec((Dp, Cp), lambda i: (0, 0)),   # w1 resident across grid steps
            pl.BlockSpec((1, Cp), lambda i: (0, 0)),    # b1 resident
            pl.BlockSpec((Cp, Yp), lambda i: (0, 0)),   # w2 resident
            pl.BlockSpec((1, Yp), lambda i: (0, 0)),    # b2 resident
        ],
        out_specs=(
            pl.BlockSpec((TB, Cp), lambda i: (i, 0)),   # lane-dense (Cp = 128k) stores
            pl.BlockSpec((TB, Yp), lambda i: (i, 0)),   # lane-dense (Yp = 128k) stores
        ),
        compiler_params=pltpu.CompilerParams(
            dimension_semantics=("parallel",),          # batch tiles independent (v7x 2 TC)
            vmem_limit_bytes=32 * 1024 * 1024,          # explicit, safe on v7x (64 MiB phys)
        ),
    )(x_p, w1_p, b1_p, w2_p, b2_p)

    # Slice padding off.
    return c_p[:B, :C], y_p[:B, :Y]


def reference(x, w1, b1, w2, b2):
    c = jnp.maximum(x @ w1 + b1, 0.0)
    y = c @ w2 + b2
    return c, y


if __name__ == "__main__":
    # Small but non-trivial batch so the kernel actually exercises the grid
    # (TB=256 -> 1 step here; grows cleanly with B).
    B, D_in, C, Y = 256, 32, 16, 8

    key = jax.random.PRNGKey(0)
    kx, k1, kb1, k2, kb2 = jax.random.split(key, 5)

    x = jax.random.normal(kx, (B, D_in), dtype=jnp.float32)
    # deterministic synthetic parameters (no checkpoint)
    w1 = jax.random.normal(k1, (D_in, C), dtype=jnp.float32) * 0.1
    b1 = jax.random.normal(kb1, (1, C), dtype=jnp.float32) * 0.1
    w2 = jax.random.normal(k2, (C, Y), dtype=jnp.float32) * 0.1
    b2 = jax.random.normal(kb2, (1, Y), dtype=jnp.float32) * 0.1

    # f32-operand path (tight tolerance). Set use_bf16_matmul=True on v6e/v7x
    # for MXU-peak throughput once the workload is compute-bound.
    c_out, y_out = full_model(x, w1, b1, w2, b2, use_bf16_matmul=False)
    jax.block_until_ready((c_out, y_out))

    c_ref, y_ref = reference(x, w1, b1, w2, b2)
    assert c_out.shape == c_ref.shape and y_out.shape == y_ref.shape
    assert jnp.allclose(c_out, c_ref, atol=1e-5), "c_out mismatch"
    assert jnp.allclose(y_out, y_ref, atol=1e-5), "y_out mismatch"

    print("KERNEL_OK")
</pallas_src>

<mosaic_0001>
module attributes {stable_mosaic.version = 11 : i64} {
  func.func @full_model_kernel(%arg0: i32, %arg1: memref<256x128xf32, #tpu.memory_space<vmem>>, %arg2: memref<128x128xf32, #tpu.memory_space<vmem>>, %arg3: memref<1x128xf32, #tpu.memory_space<vmem>>, %arg4: memref<128x128xf32, #tpu.memory_space<vmem>>, %arg5: memref<1x128xf32, #tpu.memory_space<vmem>>, %arg6: memref<256x128xf32, #tpu.memory_space<vmem>>, %arg7: memref<256x128xf32, #tpu.memory_space<vmem>>) attributes {dimension_semantics = [#tpu.dimension_semantics<parallel>], iteration_bounds = array<i64: 1>, scalar_prefetch = 0 : i64, scratch_operands = 0 : i64, tpu.core_type = #tpu.core_type<tc>, window_params = [{transform_indices = @transform_0, window_bounds = array<i64: 256, 128>}, {pipeline_mode = #tpu.pipeline_mode<synchronous>, transform_indices = @transform_1, window_bounds = array<i64: 128, 128>}, {pipeline_mode = #tpu.pipeline_mode<synchronous>, transform_indices = @transform_2, window_bounds = array<i64: 1, 128>}, {pipeline_mode = #tpu.pipeline_mode<synchronous>, transform_indices = @transform_3, window_bounds = array<i64: 128, 128>}, {pipeline_mode = #tpu.pipeline_mode<synchronous>, transform_indices = @transform_4, window_bounds = array<i64: 1, 128>}, {transform_indices = @transform_5, window_bounds = array<i64: 256, 128>}, {transform_indices = @transform_6, window_bounds = array<i64: 256, 128>}]} {
    %c0 = arith.constant 0 : index
    %c0_0 = arith.constant 0 : index
    %0 = vector.load %arg1[%c0, %c0_0] : memref<256x128xf32, #tpu.memory_space<vmem>>, vector<256x128xf32>
    %c0_1 = arith.constant 0 : index
    %c0_2 = arith.constant 0 : index
    %1 = vector.load %arg3[%c0_1, %c0_2] : memref<1x128xf32, #tpu.memory_space<vmem>>, vector<1x128xf32>
    %c0_3 = arith.constant 0 : index
    %c0_4 = arith.constant 0 : index
    %2 = vector.load %arg2[%c0_3, %c0_4] : memref<128x128xf32, #tpu.memory_space<vmem>>, vector<128x128xf32>
    %cst = arith.constant dense<0.000000e+00> : vector<256x128xf32>
    %3 = tpu.matmul %0, %2, %cst {dimension_numbers = #tpu.dot_dimension_numbers<[1], [0], [0], [1], [0, 0, 1, 1], [], []>} : vector<256x128xf32>, vector<128x128xf32>, vector<256x128xf32> -> vector<256x128xf32>
    %4 = vector.broadcast %1 : vector<1x128xf32> to vector<256x128xf32>
    %5 = arith.addf %3, %4 : vector<256x128xf32>
    %cst_5 = arith.constant 0.000000e+00 : f32
    %6 = vector.broadcast %cst_5 : f32 to vector<256x128xf32>
    %7 = arith.maximumf %5, %6 : vector<256x128xf32>
    %c0_6 = arith.constant 0 : index
    %c0_7 = arith.constant 0 : index
    %8 = vector.load %arg6[%c0_6, %c0_7] : memref<256x128xf32, #tpu.memory_space<vmem>>, vector<256x128xf32>
    tpu.vector_store %arg6[%c0_6, %c0_7], %7 {strides = array<i32>} : memref<256x128xf32, #tpu.memory_space<vmem>>, vector<256x128xf32>,
    %c0_8 = arith.constant 0 : index
    %c0_9 = arith.constant 0 : index
    %9 = vector.load %arg5[%c0_8, %c0_9] : memref<1x128xf32, #tpu.memory_space<vmem>>, vector<1x128xf32>
    %c0_10 = arith.constant 0 : index
    %c0_11 = arith.constant 0 : index
    %10 = vector.load %arg4[%c0_10, %c0_11] : memref<128x128xf32, #tpu.memory_space<vmem>>, vector<128x128xf32>
    %cst_12 = arith.constant dense<0.000000e+00> : vector<256x128xf32>
    %11 = tpu.matmul %7, %10, %cst_12 {dimension_numbers = #tpu.dot_dimension_numbers<[1], [0], [0], [1], [0, 0, 1, 1], [], []>} : vector<256x128xf32>, vector<128x128xf32>, vector<256x128xf32> -> vector<256x128xf32>
    %12 = vector.broadcast %9 : vector<1x128xf32> to vector<256x128xf32>
    %13 = arith.addf %11, %12 : vector<256x128xf32>
    %c0_13 = arith.constant 0 : index
    %c0_14 = arith.constant 0 : index
    %14 = vector.load %arg7[%c0_13, %c0_14] : memref<256x128xf32, #tpu.memory_space<vmem>>, vector<256x128xf32>
    tpu.vector_store %arg7[%c0_13, %c0_14], %13 {strides = array<i32>} : memref<256x128xf32, #tpu.memory_space<vmem>>, vector<256x128xf32>,
    return
  }
  func.func @transform_0(%arg0: i32) -> (i32, i32) {
    %c0_i32 = arith.constant 0 : i32
    %c0_i32_0 = arith.constant 0 : i32
    return %arg0, %c0_i32 : i32, i32
  }
  func.func @transform_1(%arg0: i32) -> (i32, i32) {
    %c0_i32 = arith.constant 0 : i32
    %c0_i32_0 = arith.constant 0 : i32
    %c0_i32_1 = arith.constant 0 : i32
    return %c0_i32, %c0_i32_0 : i32, i32
  }
  func.func @transform_2(%arg0: i32) -> (i32, i32) {
    %c0_i32 = arith.constant 0 : i32
    %c0_i32_0 = arith.constant 0 : i32
    %c0_i32_1 = arith.constant 0 : i32
    return %c0_i32, %c0_i32_0 : i32, i32
  }
  func.func @transform_3(%arg0: i32) -> (i32, i32) {
    %c0_i32 = arith.constant 0 : i32
    %c0_i32_0 = arith.constant 0 : i32
    %c0_i32_1 = arith.constant 0 : i32
    return %c0_i32, %c0_i32_0 : i32, i32
  }
  func.func @transform_4(%arg0: i32) -> (i32, i32) {
    %c0_i32 = arith.constant 0 : i32
    %c0_i32_0 = arith.constant 0 : i32
    %c0_i32_1 = arith.constant 0 : i32
    return %c0_i32, %c0_i32_0 : i32, i32
  }
  func.func @transform_5(%arg0: i32) -> (i32, i32) {
    %c0_i32 = arith.constant 0 : i32
    %c0_i32_0 = arith.constant 0 : i32
    return %arg0, %c0_i32 : i32, i32
  }
  func.func @transform_6(%arg0: i32) -> (i32, i32) {
    %c0_i32 = arith.constant 0 : i32
    %c0_i32_0 = arith.constant 0 : i32
    return %arg0, %c0_i32 : i32, i32
  }
}

</mosaic_0001>

<llo_original>
// kernel: tpu_custom_call.1
$region0: #{tpu_custom_call.1}
  #allocation0 [shape = 'u32[]', space=smem, size = 0x4, offset = 0x4, fixed_abs, tag = 'smem constant byte address 0x4 - core index']
  #allocation1 [shape = 'u32[72,128]{1,0:T(1,128)}', space=vmem, size = 0x9000, scoped, tag = 'internal scratch']
  %s0 = inlined_call_operand.hbm [shape: f32[256,128], index: 0, kind: input, shape index: {}]
  %s1 = inlined_call_operand.hbm [shape: f32[128,128], index: 1, kind: input, shape index: {}]
  %s2 = inlined_call_operand.vmem [shape: f32[1,128], index: 2, kind: input, shape index: {}]
  %s3 = inlined_call_operand.hbm [shape: f32[128,128], index: 3, kind: input, shape index: {}]
  %s4 = inlined_call_operand.vmem [shape: f32[1,128], index: 4, kind: input, shape index: {}]
  %s5 = inlined_call_operand.hbm [shape: f32[256,128], index: 5, kind: output, shape index: {0}]
  %s6 = inlined_call_operand.hbm [shape: f32[256,128], index: 6, kind: output, shape index: {1}]
  %7 = xla_tuple %s5, %s6
  %s8 = sld [smem:[#allocation0]]
  $region50: #{tpu_custom_call.1} parent=0
    _
  %s10 = ssub.s32 1, %s8
  %s11 = scalar_select 0, %s10, %s8
  $region1: #{tpu_custom_call.1} parent=0
    #allocation2 [shape = 'u8[131072]{0}', space=vmem, size = 0x20000, scoped, tag = 'input window, operand 0, single buffered']
    #allocation3 [shape = 's32[1]{0}', space=sflag, size = 0x4, scoped, tag = 'scoped memory for tpu_custom_call.1']
    #allocation4 [shape = 's32[1]{0}', space=sflag, size = 0x4, scoped, tag = 'scoped memory for tpu_custom_call.1']
    #allocation5 [shape = 'u8[65536]{0}', space=vmem, size = 0x10000, scoped, tag = 'input window, operand 1, single buffered']
    #allocation6 [shape = 's32[1]{0}', space=sflag, size = 0x4, scoped, tag = 'scoped memory for tpu_custom_call.1']
    #allocation7 [shape = 'u8[65536]{0}', space=vmem, size = 0x10000, scoped, tag = 'input window, operand 3, single buffered']
    #allocation8 [shape = 'u8[131072]{0}', space=vmem, size = 0x20000, scoped, tag = 'output window, operand 0, single buffered']
    #allocation9 [shape = 'u8[131072]{0}', space=vmem, size = 0x20000, scoped, tag = 'output window, operand 1, single buffered']
    #allocation10 [shape = 's32[1]{0}', space=sflag, size = 0x4, scoped, tag = 'scoped memory for tpu_custom_call.1']
    %12 = vsyncpa [#allocation3], 0
    %13 = vsyncpa [#allocation6], 0
    %14 = vsyncpa [#allocation4], 0
    %15 = vsyncpa [#allocation10], 0
    // Predicated region
    $region2: #{tpu_custom_call.1} parent=1 // pred_check
      _
    $region3: #{tpu_custom_call.1} parent=1 // pred_check_branch
      %17 = sbr.rel (0) target = $region5
    $region4: #{tpu_custom_call.1} parent=1 // pred_region
      %19 = vsyncadd [#allocation3], 0
      %s20 = sshll.u32 %s0, 4
      %s21 = int_to_ptr.hbm [resolvable:$true] %s20
      %s22 = sshll.u32 [#allocation2], 4
      %s23 = int_to_ptr.vmem [resolvable:$true] %s22
      %28 = dma.hbm_to_vmem [thread:$0]  %s21, 4096, %s23, [#allocation3], 128, 128, 8
    $region5: #{tpu_custom_call.1} parent=1 // pred_fallthru
      _
    // Predicated region
    $region6: #{tpu_custom_call.1} parent=1 // pred_check
      _
    $region7: #{tpu_custom_call.1} parent=1 // pred_check_branch
      %30 = sbr.rel (0) target = $region9
    $region8: #{tpu_custom_call.1} parent=1 // pred_region
      %32 = vsyncadd [#allocation6], 0
      %s33 = sshll.u32 %s1, 4
      %s34 = int_to_ptr.hbm [resolvable:$true] %s33
      %s35 = sshll.u32 [#allocation5], 4
      %s36 = int_to_ptr.vmem [resolvable:$true] %s35
      %41 = dma.hbm_to_vmem [thread:$0]  %s34, 2048, %s36, [#allocation6], 128, 128, 8
    $region9: #{tpu_custom_call.1} parent=1 // pred_fallthru
      _
    // Predicated region
    $region10: #{tpu_custom_call.1} parent=1 // pred_check
      _
    $region11: #{tpu_custom_call.1} parent=1 // pred_check_branch
      %43 = sbr.rel (0) target = $region13
    $region12: #{tpu_custom_call.1} parent=1 // pred_region
      _
    $region13: #{tpu_custom_call.1} parent=1 // pred_fallthru
      _
    // Predicated region
    $region14: #{tpu_custom_call.1} parent=1 // pred_check
      _
    $region15: #{tpu_custom_call.1} parent=1 // pred_check_branch
      %45 = sbr.rel (0) target = $region17
    $region16: #{tpu_custom_call.1} parent=1 // pred_region
      %47 = vsyncadd [#allocation6], 0
      %s48 = sshll.u32 %s3, 4
      %s49 = int_to_ptr.hbm [resolvable:$true] %s48
      %s50 = sshll.u32 [#allocation7], 4
      %s51 = int_to_ptr.vmem [resolvable:$true] %s50
      %56 = dma.hbm_to_vmem [thread:$0]  %s49, 2048, %s51, [#allocation6], 128, 128, 8
    $region17: #{tpu_custom_call.1} parent=1 // pred_fallthru
      _
    // Predicated region
    $region18: #{tpu_custom_call.1} parent=1 // pred_check
      _
    $region19: #{tpu_custom_call.1} parent=1 // pred_check_branch
      %58 = sbr.rel (0) target = $region21
    $region20: #{tpu_custom_call.1} parent=1 // pred_region
      _
    $region21: #{tpu_custom_call.1} parent=1 // pred_fallthru
      _
    // Predicated region
    $region22: #{tpu_custom_call.1} parent=1 // pred_check
      _
    $region23: #{tpu_custom_call.1} parent=1 // pred_check_branch
      %60 = sbr.rel (0) target = $region25
    $region24: #{tpu_custom_call.1} parent=1 // pred_region
      %62 = dma.done [#allocation3], 4096
    $region25: #{tpu_custom_call.1} parent=1 // pred_fallthru
      _
    // Predicated region
    $region26: #{tpu_custom_call.1} parent=1 // pred_check
      _
    $region27: #{tpu_custom_call.1} parent=1 // pred_check_branch
      %64 = sbr.rel (0) target = $region29
    $region28: #{tpu_custom_call.1} parent=1 // pred_region
      %66 = dma.done [#allocation6], 2048
    $region29: #{tpu_custom_call.1} parent=1 // pred_fallthru
      _
    // Predicated region
    $region30: #{tpu_custom_call.1} parent=1 // pred_check
      _
    $region31: #{tpu_custom_call.1} parent=1 // pred_check_branch
      %68 = sbr.rel (0) target = $region33
    $region32: #{tpu_custom_call.1} parent=1 // pred_region
      %70 = dma.done [#allocation6], 2048
    $region33: #{tpu_custom_call.1} parent=1 // pred_fallthru
      _
    %v71 = vld [vmem:[#allocation2] sm:$0xff]
    %v72 = vld [vmem:[#allocation2 + $0x8] sm:$0xff]
    %v73 = vld [vmem:[#allocation2 + $0x10] sm:$0xff]
    %v74 = vld [vmem:[#allocation2 + $0x18] sm:$0xff]
    %v75 = vld [vmem:[#allocation2 + $0x20] sm:$0xff]
    %v76 = vld [vmem:[#allocation2 + $0x28] sm:$0xff]
    %v77 = vld [vmem:[#allocation2 + $0x30] sm:$0xff]
    %v78 = vld [vmem:[#allocation2 + $0x38] sm:$0xff]
    %v79 = vld [vmem:[#allocation2 + $0x40] sm:$0xff]
    %v80 = vld [vmem:[#allocation2 + $0x48] sm:$0xff]
    %v81 = vld [vmem:[#allocation2 + $0x50] sm:$0xff]
    %v82 = vld [vmem:[#allocation2 + $0x58] sm:$0xff]
    %v83 = vld [vmem:[#allocation2 + $0x60] sm:$0xff]
    %v84 = vld [vmem:[#allocation2 + $0x68] sm:$0xff]
    %v85 = vld [vmem:[#allocation2 + $0x70] sm:$0xff]
    %v86 = vld [vmem:[#allocation2 + $0x78] sm:$0xff]
    %v87 = vld [vmem:[#allocation2 + $0x80] sm:$0xff]
    %v88 = vld [vmem:[#allocation2 + $0x88] sm:$0xff]
    %v89 = vld [vmem:[#allocation2 + $0x90] sm:$0xff]
    %v90 = vld [vmem:[#allocation2 + $0x98] sm:$0xff]
    %v91 = vld [vmem:[#allocation2 + $0xa0] sm:$0xff]
    %v92 = vld [vmem:[#allocation2 + $0xa8] sm:$0xff]
    %v93 = vld [vmem:[#allocation2 + $0xb0] sm:$0xff]
    %v94 = vld [vmem:[#allocation2 + $0xb8] sm:$0xff]
    %v95 = vld [vmem:[#allocation2 + $0xc0] sm:$0xff]
    %v96 = vld [vmem:[#allocation2 + $0xc8] sm:$0xff]
    %v97 = vld [vmem:[#allocation2 + $0xd0] sm:$0xff]
    %v98 = vld [vmem:[#allocation2 + $0xd8] sm:$0xff]
    %v99 = vld [vmem:[#allocation2 + $0xe0] sm:$0xff]
    %v100 = vld [vmem:[#allocation2 + $0xe8] sm:$0xff]
    %v101 = vld [vmem:[#allocation2 + $0xf0] sm:$0xff]
    %v102 = vld [vmem:[#allocation2 + $0xf8] sm:$0xff]
    %v103 = vld [vmem:[%s2] sm:$0x1]
    %v104 = vld [vmem:[#allocation5] sm:$0xff]
    %v105 = vld [vmem:[#allocation5 + $0x8] sm:$0xff]
    %v106 = vld [vmem:[#allocation5 + $0x10] sm:$0xff]
    %v107 = vld [vmem:[#allocation5 + $0x18] sm:$0xff]
    %v108 = vld [vmem:[#allocation5 + $0x20] sm:$0xff]
    %v109 = vld [vmem:[#allocation5 + $0x28] sm:$0xff]
    %v110 = vld [vmem:[#allocation5 + $0x30] sm:$0xff]
    %v111 = vld [vmem:[#allocation5 + $0x38] sm:$0xff]
    %v112 = vld [vmem:[#allocation5 + $0x40] sm:$0xff]
    %v113 = vld [vmem:[#allocation5 + $0x48] sm:$0xff]
    %v114 = vld [vmem:[#allocation5 + $0x50] sm:$0xff]
    %v115 = vld [vmem:[#allocation5 + $0x58] sm:$0xff]
    %v116 = vld [vmem:[#allocation5 + $0x60] sm:$0xff]
    %v117 = vld [vmem:[#allocation5 + $0x68] sm:$0xff]
    %v118 = vld [vmem:[#allocation5 + $0x70] sm:$0xff]
    %v119 = vld [vmem:[#allocation5 + $0x78] sm:$0xff]
    %v121 = vperm.slane %v103, 0
    %123 = vmatpush.msra.mxu0 %v119
    %124 = vmatpush.msra.mxu0 %v118
    %125 = vmatpush.msra.mxu0 %v117
    %126 = vmatpush.msra.mxu0 %v116
    %127 = vmatpush.msra.mxu0 %v115
    %128 = vmatpush.msra.mxu0 %v114
    %129 = vmatpush.msra.mxu0 %v113
    %130 = vmatpush.msra.mxu0 %v112
    %131 = vmatpush.msra.mxu0 %v111
    %132 = vmatpush.msra.mxu0 %v110
    %133 = vmatpush.msra.mxu0 %v109
    %134 = vmatpush.msra.mxu0 %v108
    %135 = vmatpush.msra.mxu0 %v107
    %136 = vmatpush.msra.mxu0 %v106
    %137 = vmatpush.msra.mxu0 %v105
    %138 = vmatpush.msra.mxu0 %v104
    %139 = vmatmul.f32.gmra.mxu0 %v71
    %v140 = vpop.f32.mrf.mxu0
    %v141 = vadd.f32 %v121, %v140
    %142 = vmatmul.f32.gmra.mxu0 %v72
    %v143 = vpop.f32.mrf.mxu0
    %v144 = vadd.f32 %v121, %v143
    %145 = vmatmul.f32.gmra.mxu0 %v73
    %v146 = vpop.f32.mrf.mxu0
    %v147 = vadd.f32 %v121, %v146
    %148 = vmatmul.f32.gmra.mxu0 %v74
    %v149 = vpop.f32.mrf.mxu0
    %v150 = vadd.f32 %v121, %v149
    %151 = vmatmul.f32.gmra.mxu0 %v75
    %v152 = vpop.f32.mrf.mxu0
    %v153 = vadd.f32 %v121, %v152
    %154 = vmatmul.f32.gmra.mxu0 %v76
    %v155 = vpop.f32.mrf.mxu0
    %v156 = vadd.f32 %v121, %v155
    %157 = vmatmul.f32.gmra.mxu0 %v77
    %v158 = vpop.f32.mrf.mxu0
    %v159 = vadd.f32 %v121, %v158
    %160 = vmatmul.f32.gmra.mxu0 %v78
    %v161 = vpop.f32.mrf.mxu0
    %v162 = vadd.f32 %v121, %v161
    %163 = vmatmul.f32.gmra.mxu0 %v79
    %v164 = vpop.f32.mrf.mxu0
    %v165 = vadd.f32 %v121, %v164
    %166 = vmatmul.f32.gmra.mxu0 %v80
    %v167 = vpop.f32.mrf.mxu0
    %v168 = vadd.f32 %v121, %v167
    %169 = vmatmul.f32.gmra.mxu0 %v81
    %v170 = vpop.f32.mrf.mxu0
    %v171 = vadd.f32 %v121, %v170
    %172 = vmatmul.f32.gmra.mxu0 %v82
    %v173 = vpop.f32.mrf.mxu0
    %v174 = vadd.f32 %v121, %v173
    %175 = vmatmul.f32.gmra.mxu0 %v83
    %v176 = vpop.f32.mrf.mxu0
    %v177 = vadd.f32 %v121, %v176
    %178 = vmatmul.f32.gmra.mxu0 %v84
    %v179 = vpop.f32.mrf.mxu0
    %v180 = vadd.f32 %v121, %v179
    %181 = vmatmul.f32.gmra.mxu0 %v85
    %v182 = vpop.f32.mrf.mxu0
    %v183 = vadd.f32 %v121, %v182
    %184 = vmatmul.f32.gmra.mxu0 %v86
    %v185 = vpop.f32.mrf.mxu0
    %v186 = vadd.f32 %v121, %v185
    %187 = vmatmul.f32.gmra.mxu0 %v87
    %v188 = vpop.f32.mrf.mxu0
    %v189 = vadd.f32 %v121, %v188
    %190 = vmatmul.f32.gmra.mxu0 %v88
    %v191 = vpop.f32.mrf.mxu0
    %v192 = vadd.f32 %v121, %v191
    %193 = vmatmul.f32.gmra.mxu0 %v89
    %v194 = vpop.f32.mrf.mxu0
    %v195 = vadd.f32 %v121, %v194
    %196 = vmatmul.f32.gmra.mxu0 %v90
    %v197 = vpop.f32.mrf.mxu0
    %v198 = vadd.f32 %v121, %v197
    %199 = vmatmul.f32.gmra.mxu0 %v91
    %v200 = vpop.f32.mrf.mxu0
    %v201 = vadd.f32 %v121, %v200
    %202 = vmatmul.f32.gmra.mxu0 %v92
    %v203 = vpop.f32.mrf.mxu0
    %v204 = vadd.f32 %v121, %v203
    %205 = vmatmul.f32.gmra.mxu0 %v93
    %v206 = vpop.f32.mrf.mxu0
    %v207 = vadd.f32 %v121, %v206
    %208 = vmatmul.f32.gmra.mxu0 %v94
    %v209 = vpop.f32.mrf.mxu0
    %v210 = vadd.f32 %v121, %v209
    %211 = vmatmul.f32.gmra.mxu0 %v95
    %v212 = vpop.f32.mrf.mxu0
    %v213 = vadd.f32 %v121, %v212
    %214 = vmatmul.f32.gmra.mxu0 %v96
    %v215 = vpop.f32.mrf.mxu0
    %v216 = vadd.f32 %v121, %v215
    %217 = vmatmul.f32.gmra.mxu0 %v97
    %v218 = vpop.f32.mrf.mxu0
    %v219 = vadd.f32 %v121, %v218
    %220 = vmatmul.f32.gmra.mxu0 %v98
    %v221 = vpop.f32.mrf.mxu0
    %v222 = vadd.f32 %v121, %v221
    %223 = vmatmul.f32.gmra.mxu0 %v99
    %v224 = vpop.f32.mrf.mxu0
    %v225 = vadd.f32 %v121, %v224
    %226 = vmatmul.f32.gmra.mxu0 %v100
    %v227 = vpop.f32.mrf.mxu0
    %v228 = vadd.f32 %v121, %v227
    %229 = vmatmul.f32.gmra.mxu0 %v101
    %v230 = vpop.f32.mrf.mxu0
    %v231 = vadd.f32 %v121, %v230
    %232 = vmatmul.f32.gmra.mxu0 %v102
    %v233 = vpop.f32.mrf.mxu0
    %v234 = vadd.f32 %v121, %v233
    %235 = vdwg.mxu0
    %v236 = vmax.f32 %v141, 0.0
    %v237 = vmax.f32 %v144, 0.0
    %v238 = vmax.f32 %v147, 0.0
    %v239 = vmax.f32 %v150, 0.0
    %v240 = vmax.f32 %v153, 0.0
    %v241 = vmax.f32 %v156, 0.0
    %v242 = vmax.f32 %v159, 0.0
    %v243 = vmax.f32 %v162, 0.0
    %v244 = vmax.f32 %v165, 0.0
    %v245 = vmax.f32 %v168, 0.0
    %v246 = vmax.f32 %v171, 0.0
    %v247 = vmax.f32 %v174, 0.0
    %v248 = vmax.f32 %v177, 0.0
    %v249 = vmax.f32 %v180, 0.0
    %v250 = vmax.f32 %v183, 0.0
    %v251 = vmax.f32 %v186, 0.0
    %v252 = vmax.f32 %v189, 0.0
    %v253 = vmax.f32 %v192, 0.0
    %v254 = vmax.f32 %v195, 0.0
    %v255 = vmax.f32 %v198, 0.0
    %v256 = vmax.f32 %v201, 0.0
    %v257 = vmax.f32 %v204, 0.0
    %v258 = vmax.f32 %v207, 0.0
    %v259 = vmax.f32 %v210, 0.0
    %v260 = vmax.f32 %v213, 0.0
    %v261 = vmax.f32 %v216, 0.0
    %v262 = vmax.f32 %v219, 0.0
    %v263 = vmax.f32 %v222, 0.0
    %v264 = vmax.f32 %v225, 0.0
    %v265 = vmax.f32 %v228, 0.0
    %v266 = vmax.f32 %v231, 0.0
    %v267 = vmax.f32 %v234, 0.0
    %268 = vst [vmem:[#allocation8] sm:$0xff] %v236
    %269 = vst [vmem:[#allocation8 + $0x8] sm:$0xff] %v237
    %270 = vst [vmem:[#allocation8 + $0x10] sm:$0xff] %v238
    %271 = vst [vmem:[#allocation8 + $0x18] sm:$0xff] %v239
    %272 = vst [vmem:[#allocation8 + $0x20] sm:$0xff] %v240
    %273 = vst [vmem:[#allocation8 + $0x28] sm:$0xff] %v241
    %274 = vst [vmem:[#allocation8 + $0x30] sm:$0xff] %v242
    %275 = vst [vmem:[#allocation8 + $0x38] sm:$0xff] %v243
    %276 = vst [vmem:[#allocation8 + $0x40] sm:$0xff] %v244
    %277 = vst [vmem:[#allocation8 + $0x48] sm:$0xff] %v245
    %278 = vst [vmem:[#allocation8 + $0x50] sm:$0xff] %v246
    %279 = vst [vmem:[#allocation8 + $0x58] sm:$0xff] %v247
    %280 = vst [vmem:[#allocation8 + $0x60] sm:$0xff] %v248
    %281 = vst [vmem:[#allocation8 + $0x68] sm:$0xff] %v249
    %282 = vst [vmem:[#allocation8 + $0x70] sm:$0xff] %v250
    %283 = vst [vmem:[#allocation8 + $0x78] sm:$0xff] %v251
    %284 = vst [vmem:[#allocation8 + $0x80] sm:$0xff] %v252
    %285 = vst [vmem:[#allocation8 + $0x88] sm:$0xff] %v253
    %286 = vst [vmem:[#allocation8 + $0x90] sm:$0xff] %v254
    %287 = vst [vmem:[#allocation8 + $0x98] sm:$0xff] %v255
    %288 = vst [vmem:[#allocation8 + $0xa0] sm:$0xff] %v256
    %289 = vst [vmem:[#allocation8 + $0xa8] sm:$0xff] %v257
    %290 = vst [vmem:[#allocation8 + $0xb0] sm:$0xff] %v258
    %291 = vst [vmem:[#allocation8 + $0xb8] sm:$0xff] %v259
    %292 = vst [vmem:[#allocation8 + $0xc0] sm:$0xff] %v260
    %293 = vst [vmem:[#allocation8 + $0xc8] sm:$0xff] %v261
    %294 = vst [vmem:[#allocation8 + $0xd0] sm:$0xff] %v262
    %295 = vst [vmem:[#allocation8 + $0xd8] sm:$0xff] %v263
    %296 = vst [vmem:[#allocation8 + $0xe0] sm:$0xff] %v264
    %297 = vst [vmem:[#allocation8 + $0xe8] sm:$0xff] %v265
    %298 = vst [vmem:[#allocation8 + $0xf0] sm:$0xff] %v266
    %299 = vst [vmem:[#allocation8 + $0xf8] sm:$0xff] %v267
    %v300 = vld [vmem:[%s4] sm:$0x1]
    %v301 = vld [vmem:[#allocation7] sm:$0xff]
    %v302 = vld [vmem:[#allocation7 + $0x8] sm:$0xff]
    %v303 = vld [vmem:[#allocation7 + $0x10] sm:$0xff]
    %v304 = vld [vmem:[#allocation7 + $0x18] sm:$0xff]
    %v305 = vld [vmem:[#allocation7 + $0x20] sm:$0xff]
    %v306 = vld [vmem:[#allocation7 + $0x28] sm:$0xff]
    %v307 = vld [vmem:[#allocation7 + $0x30] sm:$0xff]
    %v308 = vld [vmem:[#allocation7 + $0x38] sm:$0xff]
    %v309 = vld [vmem:[#allocation7 + $0x40] sm:$0xff]
    %v310 = vld [vmem:[#allocation7 + $0x48] sm:$0xff]
    %v311 = vld [vmem:[#allocation7 + $0x50] sm:$0xff]
    %v312 = vld [vmem:[#allocation7 + $0x58] sm:$0xff]
    %v313 = vld [vmem:[#allocation7 + $0x60] sm:$0xff]
    %v314 = vld [vmem:[#allocation7 + $0x68] sm:$0xff]
    %v315 = vld [vmem:[#allocation7 + $0x70] sm:$0xff]
    %v316 = vld [vmem:[#allocation7 + $0x78] sm:$0xff]
    %v318 = vperm.slane %v300, 0
    %320 = vmatpush.msra.mxu0 %v316
    %321 = vmatpush.msra.mxu0 %v315
    %322 = vmatpush.msra.mxu0 %v314
    %323 = vmatpush.msra.mxu0 %v313
    %324 = vmatpush.msra.mxu0 %v312
    %325 = vmatpush.msra.mxu0 %v311
    %326 = vmatpush.msra.mxu0 %v310
    %327 = vmatpush.msra.mxu0 %v309
    %328 = vmatpush.msra.mxu0 %v308
    %329 = vmatpush.msra.mxu0 %v307
    %330 = vmatpush.msra.mxu0 %v306
    %331 = vmatpush.msra.mxu0 %v305
    %332 = vmatpush.msra.mxu0 %v304
    %333 = vmatpush.msra.mxu0 %v303
    %334 = vmatpush.msra.mxu0 %v302
    %335 = vmatpush.msra.mxu0 %v301
    %336 = vmatmul.f32.gmra.mxu0 %v236
    %v337 = vpop.f32.mrf.mxu0
    %v338 = vadd.f32 %v318, %v337
    %339 = vmatmul.f32.gmra.mxu0 %v237
    %v340 = vpop.f32.mrf.mxu0
    %v341 = vadd.f32 %v318, %v340
    %342 = vmatmul.f32.gmra.mxu0 %v238
    %v343 = vpop.f32.mrf.mxu0
    %v344 = vadd.f32 %v318, %v343
    %345 = vmatmul.f32.gmra.mxu0 %v239
    %v346 = vpop.f32.mrf.mxu0
    %v347 = vadd.f32 %v318, %v346
    %348 = vmatmul.f32.gmra.mxu0 %v240
    %v349 = vpop.f32.mrf.mxu0
    %v350 = vadd.f32 %v318, %v349
    %351 = vmatmul.f32.gmra.mxu0 %v241
    %v352 = vpop.f32.mrf.mxu0
    %v353 = vadd.f32 %v318, %v352
    %354 = vmatmul.f32.gmra.mxu0 %v242
    %v355 = vpop.f32.mrf.mxu0
    %v356 = vadd.f32 %v318, %v355
    %357 = vmatmul.f32.gmra.mxu0 %v243
    %v358 = vpop.f32.mrf.mxu0
    %v359 = vadd.f32 %v318, %v358
    %360 = vmatmul.f32.gmra.mxu0 %v244
    %v361 = vpop.f32.mrf.mxu0
    %v362 = vadd.f32 %v318, %v361
    %363 = vmatmul.f32.gmra.mxu0 %v245
    %v364 = vpop.f32.mrf.mxu0
    %v365 = vadd.f32 %v318, %v364
    %366 = vmatmul.f32.gmra.mxu0 %v246
    %v367 = vpop.f32.mrf.mxu0
    %v368 = vadd.f32 %v318, %v367
    %369 = vmatmul.f32.gmra.mxu0 %v247
    %v370 = vpop.f32.mrf.mxu0
    %v371 = vadd.f32 %v318, %v370
    %372 = vmatmul.f32.gmra.mxu0 %v248
    %v373 = vpop.f32.mrf.mxu0
    %v374 = vadd.f32 %v318, %v373
    %375 = vmatmul.f32.gmra.mxu0 %v249
    %v376 = vpop.f32.mrf.mxu0
    %v377 = vadd.f32 %v318, %v376
    %378 = vmatmul.f32.gmra.mxu0 %v250
    %v379 = vpop.f32.mrf.mxu0
    %v380 = vadd.f32 %v318, %v379
    %381 = vmatmul.f32.gmra.mxu0 %v251
    %v382 = vpop.f32.mrf.mxu0
    %v383 = vadd.f32 %v318, %v382
    %384 = vmatmul.f32.gmra.mxu0 %v252
    %v385 = vpop.f32.mrf.mxu0
    %v386 = vadd.f32 %v318, %v385
    %387 = vmatmul.f32.gmra.mxu0 %v253
    %v388 = vpop.f32.mrf.mxu0
    %v389 = vadd.f32 %v318, %v388
    %390 = vmatmul.f32.gmra.mxu0 %v254
    %v391 = vpop.f32.mrf.mxu0
    %v392 = vadd.f32 %v318, %v391
    %393 = vmatmul.f32.gmra.mxu0 %v255
    %v394 = vpop.f32.mrf.mxu0
    %v395 = vadd.f32 %v318, %v394
    %396 = vmatmul.f32.gmra.mxu0 %v256
    %v397 = vpop.f32.mrf.mxu0
    %v398 = vadd.f32 %v318, %v397
    %399 = vmatmul.f32.gmra.mxu0 %v257
    %v400 = vpop.f32.mrf.mxu0
    %v401 = vadd.f32 %v318, %v400
    %402 = vmatmul.f32.gmra.mxu0 %v258
    %v403 = vpop.f32.mrf.mxu0
    %v404 = vadd.f32 %v318, %v403
    %405 = vmatmul.f32.gmra.mxu0 %v259
    %v406 = vpop.f32.mrf.mxu0
    %v407 = vadd.f32 %v318, %v406
    %408 = vmatmul.f32.gmra.mxu0 %v260
    %v409 = vpop.f32.mrf.mxu0
    %v410 = vadd.f32 %v318, %v409
    %411 = vmatmul.f32.gmra.mxu0 %v261
    %v412 = vpop.f32.mrf.mxu0
    %v413 = vadd.f32 %v318, %v412
    %414 = vmatmul.f32.gmra.mxu0 %v262
    %v415 = vpop.f32.mrf.mxu0
    %v416 = vadd.f32 %v318, %v415
    %417 = vmatmul.f32.gmra.mxu0 %v263
    %v418 = vpop.f32.mrf.mxu0
    %v419 = vadd.f32 %v318, %v418
    %420 = vmatmul.f32.gmra.mxu0 %v264
    %v421 = vpop.f32.mrf.mxu0
    %v422 = vadd.f32 %v318, %v421
    %423 = vmatmul.f32.gmra.mxu0 %v265
    %v424 = vpop.f32.mrf.mxu0
    %v425 = vadd.f32 %v318, %v424
    %426 = vmatmul.f32.gmra.mxu0 %v266
    %v427 = vpop.f32.mrf.mxu0
    %v428 = vadd.f32 %v318, %v427
    %429 = vmatmul.f32.gmra.mxu0 %v267
    %v430 = vpop.f32.mrf.mxu0
    %v431 = vadd.f32 %v318, %v430
    %432 = vdwg.mxu0
    %433 = vst [vmem:[#allocation9] sm:$0xff] %v338
    %434 = vst [vmem:[#allocation9 + $0x8] sm:$0xff] %v341
    %435 = vst [vmem:[#allocation9 + $0x10] sm:$0xff] %v344
    %436 = vst [vmem:[#allocation9 + $0x18] sm:$0xff] %v347
    %437 = vst [vmem:[#allocation9 + $0x20] sm:$0xff] %v350
    %438 = vst [vmem:[#allocation9 + $0x28] sm:$0xff] %v353
    %439 = vst [vmem:[#allocation9 + $0x30] sm:$0xff] %v356
    %440 = vst [vmem:[#allocation9 + $0x38] sm:$0xff] %v359
    %441 = vst [vmem:[#allocation9 + $0x40] sm:$0xff] %v362
    %442 = vst [vmem:[#allocation9 + $0x48] sm:$0xff] %v365
    %443 = vst [vmem:[#allocation9 + $0x50] sm:$0xff] %v368
    %444 = vst [vmem:[#allocation9 + $0x58] sm:$0xff] %v371
    %445 = vst [vmem:[#allocation9 + $0x60] sm:$0xff] %v374
    %446 = vst [vmem:[#allocation9 + $0x68] sm:$0xff] %v377
    %447 = vst [vmem:[#allocation9 + $0x70] sm:$0xff] %v380
    %448 = vst [vmem:[#allocation9 + $0x78] sm:$0xff] %v383
    %449 = vst [vmem:[#allocation9 + $0x80] sm:$0xff] %v386
    %450 = vst [vmem:[#allocation9 + $0x88] sm:$0xff] %v389
    %451 = vst [vmem:[#allocation9 + $0x90] sm:$0xff] %v392
    %452 = vst [vmem:[#allocation9 + $0x98] sm:$0xff] %v395
    %453 = vst [vmem:[#allocation9 + $0xa0] sm:$0xff] %v398
    %454 = vst [vmem:[#allocation9 + $0xa8] sm:$0xff] %v401
    %455 = vst [vmem:[#allocation9 + $0xb0] sm:$0xff] %v404
    %456 = vst [vmem:[#allocation9 + $0xb8] sm:$0xff] %v407
    %457 = vst [vmem:[#allocation9 + $0xc0] sm:$0xff] %v410
    %458 = vst [vmem:[#allocation9 + $0xc8] sm:$0xff] %v413
    %459 = vst [vmem:[#allocation9 + $0xd0] sm:$0xff] %v416
    %460 = vst [vmem:[#allocation9 + $0xd8] sm:$0xff] %v419
    %461 = vst [vmem:[#allocation9 + $0xe0] sm:$0xff] %v422
    %462 = vst [vmem:[#allocation9 + $0xe8] sm:$0xff] %v425
    %463 = vst [vmem:[#allocation9 + $0xf0] sm:$0xff] %v428
    %464 = vst [vmem:[#allocation9 + $0xf8] sm:$0xff] %v431
    // Predicated region
    $region34: #{tpu_custom_call.1} parent=1 // pred_check
      _
    $region35: #{tpu_custom_call.1} parent=1 // pred_check_branch
      %466 = sbr.rel (0) target = $region37
    $region36: #{tpu_custom_call.1} parent=1 // pred_region
      %468 = vsyncadd [#allocation4], 0
      %s469 = sshll.u32 [#allocation8], 4
      %s470 = int_to_ptr.vmem [resolvable:$true] %s469
      %s471 = sshll.u32 %s5, 4
      %s472 = int_to_ptr.hbm [resolvable:$true] %s471
      %477 = dma.vmem_to_hbm [thread:$0]  %s470, 4096, %s472, [#allocation4], 128, 128, 8
    $region37: #{tpu_custom_call.1} parent=1 // pred_fallthru
      _
    // Predicated region
    $region38: #{tpu_custom_call.1} parent=1 // pred_check
      _
    $region39: #{tpu_custom_call.1} parent=1 // pred_check_branch
      %479 = sbr.rel (0) target = $region41
    $region40: #{tpu_custom_call.1} parent=1 // pred_region
      %481 = vsyncadd [#allocation10], 0
      %s482 = sshll.u32 [#allocation9], 4
      %s483 = int_to_ptr.vmem [resolvable:$true] %s482
      %s484 = sshll.u32 %s6, 4
      %s485 = int_to_ptr.hbm [resolvable:$true] %s484
      %490 = dma.vmem_to_hbm [thread:$0]  %s483, 4096, %s485, [#allocation10], 128, 128, 8
    $region41: #{tpu_custom_call.1} parent=1 // pred_fallthru
      _
    // Predicated region
    $region42: #{tpu_custom_call.1} parent=1 // pred_check
      _
    $region43: #{tpu_custom_call.1} parent=1 // pred_check_branch
      %492 = sbr.rel (0) target = $region45
    $region44: #{tpu_custom_call.1} parent=1 // pred_region
      %494 = dma.done [#allocation4], 4096
    $region45: #{tpu_custom_call.1} parent=1 // pred_fallthru
      _
    // Predicated region
    $region46: #{tpu_custom_call.1} parent=1 // pred_check
      _
    $region47: #{tpu_custom_call.1} parent=1 // pred_check_branch
      %496 = sbr.rel (0) target = $region49
    $region48: #{tpu_custom_call.1} parent=1 // pred_region
      %498 = dma.done [#allocation10], 4096
    $region49: #{tpu_custom_call.1} parent=1 // pred_fallthru
      _
    %499 = vsyncpa [#allocation3], 1
    %500 = vsyncpa [#allocation6], 1
    %501 = vsyncpa [#allocation4], 1
    %502 = vsyncpa [#allocation10], 1

</llo_original>
